<compile_context>
chip_gen: v7x
topology: tpu7x:2x2x1
jax: 0.10.0
libtpu: 0.0.40
codegen_flags: <defaults>
</compile_context>

<pallas_src>
import functools

import jax
import jax.numpy as jnp
from jax.experimental import pallas as pl
from jax.experimental.pallas import tpu as pltpu


def _kd_loss_kernel(x_ref, t_ref, out_ref, *, temp_factor, n_rows, block_n,
                    n_classes, ragged):
    """One batch tile: partial sum of KL(target || softmax(x/T)).

    Writes an (8, 128) lane-dense partial-sum block per grid step so the grid
    axis can be 'parallel' and the final cross-lane reduce happens once, in
    the wrapper.
    """
    x = x_ref[...].astype(jnp.float32) * (1.0 / temp_factor)
    t = t_ref[...].astype(jnp.float32)

    if ragged:
        # Mask rows belonging to grid padding so they contribute exactly 0.
        i = pl.program_id(0)
        row_ids = jax.lax.broadcasted_iota(jnp.int32, (block_n, 1), 0)
        valid = (i * block_n + row_ids) < n_rows
        x = jnp.where(valid, x, 0.0)
        t = jnp.where(valid, t, 0.0)

    # --- log_softmax(input / T, axis=-1) in f32 ---
    m = jnp.max(x, axis=-1, keepdims=True)
    z = x - m
    lse = jnp.log(jnp.sum(jnp.exp(z), axis=-1, keepdims=True))
    log_p = z - lse  # (block_n, C)

    # --- KLDivLoss(reduction='sum') pointwise: t*log(t) - t*log_p, with the
    # PyTorch xlogy convention (entries where t == 0 contribute 0). ---
    # TODO(synk): if EUP saturates on v7x, the sigma t*log(t) term (student-
    # independent) could be folded into the caller that builds `target`.
    safe_t = jnp.where(t > 0.0, t, 1.0)
    pointwise = jnp.where(t > 0.0, t * jnp.log(safe_t), 0.0) - t * log_p

    if n_classes % 128 == 0 and block_n % 8 == 0:
        # Pure-VPU reduction: one static (8,128) slice + vreg add per vreg of
        # the tile; no per-tile XLU full reduce, no masked (1,1) store.
        acc = jnp.zeros((8, 128), jnp.float32)
        for r0 in range(0, block_n, 8):
            for c0 in range(0, n_classes, 128):
                acc = acc + pointwise[r0:r0 + 8, c0:c0 + 128]
        out_ref[...] = acc
    else:
        # Generic fallback (e.g. C not a multiple of 128): full reduce, then
        # place the scalar at [0, 0] of the lane-dense output block.
        s = jnp.sum(pointwise)
        rows = jax.lax.broadcasted_iota(jnp.int32, (8, 128), 0)
        cols = jax.lax.broadcasted_iota(jnp.int32, (8, 128), 1)
        out_ref[...] = jnp.where((rows == 0) & (cols == 0), s, 0.0)


def kd_loss(logits, target, temp_factor=4.0, block_n=None,
            target_block_bytes=1 << 20):
    """Pallas implementation of KDLoss.forward(input, target)."""
    n, c = logits.shape
    assert target.shape == (n, c)

    if block_n is None:
        # Size the batch tile so each input block is ~target_block_bytes.
        itemsize = max(logits.dtype.itemsize, target.dtype.itemsize)
        bn = (target_block_bytes // (itemsize * c)) // 8 * 8
        bn = max(8, bn)
        n_pad = -(-n // 8) * 8
        block_n = int(min(bn, n_pad))

    num_blocks = int(pl.cdiv(n, block_n))
    ragged = (n % block_n) != 0

    kernel = functools.partial(
        _kd_loss_kernel,
        temp_factor=float(temp_factor),
        n_rows=n,
        block_n=block_n,
        n_classes=c,
        ragged=ragged,
    )

    in_bytes = (logits.size * logits.dtype.itemsize
                + target.size * target.dtype.itemsize)
    out_bytes = num_blocks * 8 * 128 * 4
    block_in_bytes = block_n * c * (logits.dtype.itemsize
                                    + target.dtype.itemsize)
    # 2 inputs x 2 pipeline buffers + f32 intermediates, with headroom;
    # clamped so it stays valid on v5e/v6e/v7x.
    vmem_limit = int(min(max(8 * block_in_bytes + (8 << 20), 32 << 20),
                         64 << 20))

    partials = pl.pallas_call(
        kernel,
        out_shape=jax.ShapeDtypeStruct((num_blocks * 8, 128), jnp.float32),
        grid_spec=pltpu.PrefetchScalarGridSpec(
            num_scalar_prefetch=0,
            grid=(num_blocks,),
            in_specs=[
                pl.BlockSpec((block_n, c), lambda i: (i, 0)),
                pl.BlockSpec((block_n, c), lambda i: (i, 0)),
            ],
            out_specs=pl.BlockSpec((8, 128), lambda i: (i, 0)),
        ),
        compiler_params=pltpu.CompilerParams(
            dimension_semantics=("parallel",),
            vmem_limit_bytes=vmem_limit,
        ),
        cost_estimate=pl.CostEstimate(
            flops=10 * n * c,
            transcendentals=2 * n * c,
            bytes_accessed=in_bytes + out_bytes,
        ),
    )(logits, target)

    # Final reduce + scalar scaling (glue): * T^2 / batch_size
    return jnp.sum(partials) * (temp_factor ** 2) / n


def kd_loss_ref(logits, target, temp_factor=4.0):
    """Pure-JAX reference for validation."""
    log_p = jax.nn.log_softmax(logits.astype(jnp.float32) / temp_factor, axis=1)
    t = target.astype(jnp.float32)
    safe_t = jnp.where(t > 0.0, t, 1.0)
    kl = jnp.sum(jnp.where(t > 0.0, t * jnp.log(safe_t), 0.0) - t * log_p)
    return kl * (temp_factor ** 2) / logits.shape[0]


if __name__ == "__main__":
    key = jax.random.PRNGKey(0)
    k1, k2 = jax.random.split(key)

    N, C = 16, 128  # small batch, class dim aligned to lane width
    temp_factor = 4.0

    # Student logits and teacher soft targets (softmax of teacher logits / T).
    student_logits = jax.random.normal(k1, (N, C), dtype=jnp.float32) * 2.0
    teacher_logits = jax.random.normal(k2, (N, C), dtype=jnp.float32) * 2.0
    target = jax.nn.softmax(teacher_logits / temp_factor, axis=1)

    loss = kd_loss(student_logits, target, temp_factor=temp_factor)
    loss = jax.block_until_ready(loss)

    ref = kd_loss_ref(student_logits, target, temp_factor=temp_factor)
    assert jnp.allclose(loss, ref, rtol=1e-4, atol=1e-5), (loss, ref)

    print("KERNEL_OK")
</pallas_src>

<mosaic_0001>
module attributes {stable_mosaic.version = 11 : i64} {
  func.func @_kd_loss_kernel(%arg0: i32, %arg1: memref<16x128xf32, #tpu.memory_space<vmem>>, %arg2: memref<16x128xf32, #tpu.memory_space<vmem>>, %arg3: memref<8x128xf32, #tpu.memory_space<vmem>>) attributes {dimension_semantics = [#tpu.dimension_semantics<parallel>], iteration_bounds = array<i64: 1>, scalar_prefetch = 0 : i64, scratch_operands = 0 : i64, tpu.core_type = #tpu.core_type<tc>, window_params = [{transform_indices = @transform_0, window_bounds = array<i64: 16, 128>}, {transform_indices = @transform_1, window_bounds = array<i64: 16, 128>}, {transform_indices = @transform_2, window_bounds = array<i64: 8, 128>}]} {
    %c0 = arith.constant 0 : index
    %c0_0 = arith.constant 0 : index
    %0 = vector.load %arg1[%c0, %c0_0] : memref<16x128xf32, #tpu.memory_space<vmem>>, vector<16x128xf32>
    %cst = arith.constant 2.500000e-01 : f32
    %1 = vector.broadcast %cst : f32 to vector<16x128xf32>
    %2 = arith.mulf %0, %1 : vector<16x128xf32>
    %c0_1 = arith.constant 0 : index
    %c0_2 = arith.constant 0 : index
    %3 = vector.load %arg2[%c0_1, %c0_2] : memref<16x128xf32, #tpu.memory_space<vmem>>, vector<16x128xf32>
    %cst_3 = arith.constant dense<0xFF800000> : vector<16xf32>
    %4 = vector.multi_reduction <maximumf>, %2, %cst_3 [1] : vector<16x128xf32> to vector<16xf32>
    %5 = vector.shape_cast %4 : vector<16xf32> to vector<16x1xf32>
    %6 = vector.broadcast %5 : vector<16x1xf32> to vector<16x128xf32>
    %7 = arith.subf %2, %6 : vector<16x128xf32>
    %8 = math.exp %7 : vector<16x128xf32>
    %cst_4 = arith.constant dense<0.000000e+00> : vector<16xf32>
    %9 = vector.multi_reduction <add>, %8, %cst_4 [1] : vector<16x128xf32> to vector<16xf32>
    %10 = vector.shape_cast %9 : vector<16xf32> to vector<16x1xf32>
    %11 = math.log %10 : vector<16x1xf32>
    %12 = vector.broadcast %11 : vector<16x1xf32> to vector<16x128xf32>
    %13 = arith.subf %7, %12 : vector<16x128xf32>
    %cst_5 = arith.constant 0.000000e+00 : f32
    %14 = vector.broadcast %cst_5 : f32 to vector<16x128xf32>
    %15 = arith.cmpf ogt, %3, %14 : vector<16x128xf32>
    %cst_6 = arith.constant 1.000000e+00 : f32
    %16 = vector.broadcast %cst_6 : f32 to vector<16x128xf32>
    %17 = arith.select %15, %3, %16 : vector<16x128xi1>, vector<16x128xf32>
    %cst_7 = arith.constant 0.000000e+00 : f32
    %18 = vector.broadcast %cst_7 : f32 to vector<16x128xf32>
    %19 = arith.cmpf ogt, %3, %18 : vector<16x128xf32>
    %20 = math.log %17 : vector<16x128xf32>
    %21 = arith.mulf %3, %20 : vector<16x128xf32>
    %cst_8 = arith.constant 0.000000e+00 : f32
    %22 = vector.broadcast %cst_8 : f32 to vector<16x128xf32>
    %23 = arith.select %19, %21, %22 : vector<16x128xi1>, vector<16x128xf32>
    %24 = arith.mulf %3, %13 : vector<16x128xf32>
    %25 = arith.subf %23, %24 : vector<16x128xf32>
    %cst_9 = arith.constant 0.000000e+00 : f32
    %26 = vector.broadcast %cst_9 : f32 to vector<8x128xf32>
    %27 = vector.extract_strided_slice %25 {offsets = [0, 0], sizes = [8, 128], strides = [1, 1]} : vector<16x128xf32> to vector<8x128xf32>
    %28 = arith.addf %26, %27 : vector<8x128xf32>
    %29 = vector.extract_strided_slice %25 {offsets = [8, 0], sizes = [8, 128], strides = [1, 1]} : vector<16x128xf32> to vector<8x128xf32>
    %30 = arith.addf %28, %29 : vector<8x128xf32>
    %c0_10 = arith.constant 0 : index
    %c0_11 = arith.constant 0 : index
    %31 = vector.load %arg3[%c0_10, %c0_11] : memref<8x128xf32, #tpu.memory_space<vmem>>, vector<8x128xf32>
    tpu.vector_store %arg3[%c0_10, %c0_11], %30 {strides = array<i32>} : memref<8x128xf32, #tpu.memory_space<vmem>>, vector<8x128xf32>,
    return
  }
  func.func @transform_0(%arg0: i32) -> (i32, i32) {
    %c0_i32 = arith.constant 0 : i32
    %c0_i32_0 = arith.constant 0 : i32
    return %arg0, %c0_i32 : i32, i32
  }
  func.func @transform_1(%arg0: i32) -> (i32, i32) {
    %c0_i32 = arith.constant 0 : i32
    %c0_i32_0 = arith.constant 0 : i32
    return %arg0, %c0_i32 : i32, i32
  }
  func.func @transform_2(%arg0: i32) -> (i32, i32) {
    %c0_i32 = arith.constant 0 : i32
    %c0_i32_0 = arith.constant 0 : i32
    return %arg0, %c0_i32 : i32, i32
  }
}

</mosaic_0001>

<llo_original>
// kernel: tpu_custom_call.1
$region0: #{tpu_custom_call.1}
  #allocation0 [shape = 'u32[]', space=smem, size = 0x4, offset = 0x4, fixed_abs, tag = 'smem constant byte address 0x4 - core index']
  #allocation1 [shape = 'u32[144,128]{1,0:T(1,128)}', space=vmem, size = 0x12000, scoped, tag = 'internal scratch']
  %s0 = inlined_call_operand.hbm [shape: f32[16,128], index: 0, kind: input, shape index: {}]
  %s1 = inlined_call_operand.hbm [shape: f32[16,128], index: 1, kind: input, shape index: {}]
  %s2 = inlined_call_operand.hbm [shape: f32[8,128], index: 2, kind: output, shape index: {}]
  %s3 = sld [smem:[#allocation0]]
  $region26: #{tpu_custom_call.1} parent=0
    _
  %s5 = ssub.s32 1, %s3
  %s6 = scalar_select 0, %s5, %s3
  $region1: #{tpu_custom_call.1} parent=0
    #allocation2 [shape = 'u8[8192]{0}', space=vmem, size = 0x2000, scoped, tag = 'input window, operand 0, single buffered']
    #allocation3 [shape = 's32[1]{0}', space=sflag, size = 0x4, scoped, tag = 'scoped memory for tpu_custom_call.1']
    #allocation4 [shape = 's32[1]{0}', space=sflag, size = 0x4, scoped, tag = 'scoped memory for tpu_custom_call.1']
    #allocation5 [shape = 'u8[8192]{0}', space=vmem, size = 0x2000, scoped, tag = 'input window, operand 1, single buffered']
    #allocation6 [shape = 's32[1]{0}', space=sflag, size = 0x4, scoped, tag = 'scoped memory for tpu_custom_call.1']
    #allocation7 [shape = 'u8[4096]{0}', space=vmem, size = 0x1000, scoped, tag = 'output window, operand 0, single buffered']
    %7 = vsyncpa [#allocation3], 0
    %8 = vsyncpa [#allocation6], 0
    %9 = vsyncpa [#allocation4], 0
    // Predicated region
    $region2: #{tpu_custom_call.1} parent=1 // pred_check
      _
    $region3: #{tpu_custom_call.1} parent=1 // pred_check_branch
      %11 = sbr.rel (0) target = $region5
    $region4: #{tpu_custom_call.1} parent=1 // pred_region
      %s13 = ssub.s32 256, 256
      %14 = vsyncadd [#allocation3], %s13
      %s15 = sshll.u32 [#allocation2], 4
      %s16 = int_to_ptr.vmem [resolvable:$true] %s15
      %21 = dma.hbm_to_vmem [thread:$0]  %s0, 256, %s16, [#allocation3], 128, 128, 8
    $region5: #{tpu_custom_call.1} parent=1 // pred_fallthru
      _
    // Predicated region
    $region6: #{tpu_custom_call.1} parent=1 // pred_check
      _
    $region7: #{tpu_custom_call.1} parent=1 // pred_check_branch
      %23 = sbr.rel (0) target = $region9
    $region8: #{tpu_custom_call.1} parent=1 // pred_region
      %s25 = ssub.s32 256, 256
      %26 = vsyncadd [#allocation6], %s25
      %s27 = sshll.u32 [#allocation5], 4
      %s28 = int_to_ptr.vmem [resolvable:$true] %s27
      %33 = dma.hbm_to_vmem [thread:$0]  %s1, 256, %s28, [#allocation6], 128, 128, 8
    $region9: #{tpu_custom_call.1} parent=1 // pred_fallthru
      _
    // Predicated region
    $region10: #{tpu_custom_call.1} parent=1 // pred_check
      _
    $region11: #{tpu_custom_call.1} parent=1 // pred_check_branch
      %35 = sbr.rel (0) target = $region13
    $region12: #{tpu_custom_call.1} parent=1 // pred_region
      %36 = dma.done [#allocation3], 256
    $region13: #{tpu_custom_call.1} parent=1 // pred_fallthru
      _
    // Predicated region
    $region14: #{tpu_custom_call.1} parent=1 // pred_check
      _
    $region15: #{tpu_custom_call.1} parent=1 // pred_check_branch
      %38 = sbr.rel (0) target = $region17
    $region16: #{tpu_custom_call.1} parent=1 // pred_region
      %39 = dma.done [#allocation6], 256
    $region17: #{tpu_custom_call.1} parent=1 // pred_fallthru
      _
    %v40 = vld [vmem:[#allocation2] sm:$0xff]
    %v41 = vld [vmem:[#allocation2 + $0x8] sm:$0xff]
    %v42 = vmul.f32 %v40, 0.25
    %v43 = vmul.f32 %v41, 0.25
    %v44 = vld [vmem:[#allocation5] sm:$0xff]
    %v45 = vld [vmem:[#allocation5 + $0x8] sm:$0xff]
    %46 = vmax.xlane.f32.xlu0 %v42
    %v47 = vpop.xlane.xlu0 %46
    %48 = vmax.xlane.f32.xlu0 %v43
    %v49 = vpop.xlane.xlu0 %48
    %v50 = vsub.f32 %v42, %v47
    %v51 = vsub.f32 %v43, %v49
    %v52 = vmul.f32 %v50, 1.442695
    %v53 = vpow.pop %v52
    %v54 = vmul.f32 %v51, 1.442695
    %v55 = vpow.pop %v54
    %56 = vadd.xlane.f32.xlu0 %v53
    %v57 = vpop.xlane.xlu0 %56
    %58 = vadd.xlane.f32.xlu0 %v55
    %v59 = vpop.xlane.xlu0 %58
    %v60 = vlog2.pop %v57
    %v61 = vmul.f32 %v60, 0.6931472
    %v62 = vlog2.pop %v59
    %v63 = vmul.f32 %v62, 0.6931472
    %v64 = vsub.f32 %v50, %v61
    %v65 = vsub.f32 %v51, %v63
    %vm66 = vcmp.gt.f32.partialorder %v44, 0.0
    %vm67 = vcmp.gt.f32.partialorder %v45, 0.0
    %v68 = vsel %vm66, %v44, 1.0
    %v69 = vsel %vm67, %v45, 1.0
    %v70 = vlog2.pop %v68
    %v71 = vmul.f32 %v70, 0.6931472
    %v72 = vlog2.pop %v69
    %v73 = vmul.f32 %v72, 0.6931472
    %v74 = vmul.f32 %v44, %v71
    %v75 = vmul.f32 %v45, %v73
    %v76 = vsel %vm66, %v74, 0.0
    %v77 = vsel %vm67, %v75, 0.0
    %v78 = vmul.f32 %v44, %v64
    %v79 = vmul.f32 %v45, %v65
    %v80 = vsub.f32 %v76, %v78
    %v81 = vsub.f32 %v77, %v79
    %v82 = vadd.f32 %v80, 0.0
    %v83 = vadd.f32 %v82, %v81
    %84 = vst [vmem:[#allocation7] sm:$0xff] %v83
    // Predicated region
    $region18: #{tpu_custom_call.1} parent=1 // pred_check
      _
    $region19: #{tpu_custom_call.1} parent=1 // pred_check_branch
      %86 = sbr.rel (0) target = $region21
    $region20: #{tpu_custom_call.1} parent=1 // pred_region
      %s88 = ssub.s32 128, 128
      %89 = vsyncadd [#allocation4], %s88
      %s91 = sshll.u32 [#allocation7], 4
      %s92 = int_to_ptr.vmem [resolvable:$true] %s91
      %94 = dma.vmem_to_hbm [thread:$0]  %s92, 128, %s2, [#allocation4]
    $region21: #{tpu_custom_call.1} parent=1 // pred_fallthru
      _
    // Predicated region
    $region22: #{tpu_custom_call.1} parent=1 // pred_check
      _
    $region23: #{tpu_custom_call.1} parent=1 // pred_check_branch
      %96 = sbr.rel (0) target = $region25
    $region24: #{tpu_custom_call.1} parent=1 // pred_region
      %97 = dma.done [#allocation4], 128
    $region25: #{tpu_custom_call.1} parent=1 // pred_fallthru
      _
    %98 = vsyncpa [#allocation3], 1
    %99 = vsyncpa [#allocation6], 1
    %100 = vsyncpa [#allocation4], 1

</llo_original>
